<compile_context>
chip_gen: v5e
topology: v5e:2x2
jax: 0.10.0
libtpu: 0.0.40
codegen_flags: <defaults>
</compile_context>

<pallas_src>
import jax
import jax.numpy as jnp
from jax.experimental import pallas as pl
from jax.experimental.pallas import tpu as pltpu


def policy_mlp_kernel(x_ref, w1_ref, b1_ref, w2_ref, b2_ref, w3_ref, b3_ref,
                      o_ref):
    x = x_ref[...]
    # fc1 + relu  (dropout = identity in eval mode)
    h1 = jnp.dot(x, w1_ref[...], preferred_element_type=jnp.float32)
    h1 = jnp.maximum(h1 + b1_ref[...], 0.0)
    # fc2 + relu  (dropout = identity in eval mode)
    h2 = jnp.dot(h1, w2_ref[...], preferred_element_type=jnp.float32)
    h2 = jnp.maximum(h2 + b2_ref[...], 0.0)
    # fc3 + tanh
    h3 = jnp.dot(h2, w3_ref[...], preferred_element_type=jnp.float32)
    o_ref[...] = jnp.tanh(h3 + b3_ref[...]).astype(o_ref.dtype)


def _round_up(n, m):
    return pl.cdiv(n, m) * m


def policy_network_forward(x, w1, b1, w2, b2, w3, b3, *, tm=2048):
    """x: (B, input_size); weights (in, out); biases (1, out). Returns f32."""
    B, in_size = x.shape
    hid = w1.shape[1]
    out_size = w3.shape[1]

    # Batch tile: multiple of 8 sublanes.  Keep >= 2 grid steps when the
    # batch allows it (so both v7x TensorCores get work); never exceed the
    # (rounded-up) batch.  The ragged last block is masked by Pallas.
    tm = max(8, _round_up(tm, 8))
    if B > 8:
        tm = min(tm, _round_up(pl.cdiv(B, 2), 8))
    tm = min(tm, _round_up(B, 8))
    grid = (pl.cdiv(B, tm),)

    # Weights/biases: full-array blocks with constant index maps -> fetched
    # once and kept resident in VMEM across all batch tiles.
    def resident(a):
        return pl.BlockSpec(a.shape, lambda i: (0, 0))

    flops = 2 * B * (in_size * hid + hid * hid + hid * out_size)
    bytes_accessed = (
        x.size * x.dtype.itemsize
        + B * out_size * 4
        + sum(a.size * a.dtype.itemsize for a in (w1, b1, w2, b2, w3, b3)))
    cost = pl.CostEstimate(flops=flops,
                           transcendentals=B * out_size,
                           bytes_accessed=bytes_accessed)

    return pl.pallas_call(
        policy_mlp_kernel,
        out_shape=jax.ShapeDtypeStruct((B, out_size), jnp.float32),
        grid=grid,
        in_specs=[
            pl.BlockSpec((tm, in_size), lambda i: (i, 0)),
            resident(w1), resident(b1),
            resident(w2), resident(b2),
            resident(w3), resident(b3),
        ],
        out_specs=pl.BlockSpec((tm, out_size), lambda i: (i, 0)),
        compiler_params=pltpu.CompilerParams(
            dimension_semantics=("parallel",)),
        cost_estimate=cost,
    )(x, w1, b1, w2, b2, w3, b3)


def xavier_uniform(key, fan_in, fan_out, dtype=jnp.float32):
    # matches nn.init.xavier_uniform_ (gain=1)
    limit = (6.0 / (fan_in + fan_out)) ** 0.5
    return jax.random.uniform(key, (fan_in, fan_out), dtype,
                              minval=-limit, maxval=limit)


def _ref_forward(x, w1, b1, w2, b2, w3, b3):
    h1 = jnp.maximum(x @ w1 + b1, 0.0)
    h2 = jnp.maximum(h1 @ w2 + b2, 0.0)
    return jnp.tanh(h2 @ w3 + b3)


if __name__ == "__main__":
    input_size, hidden_size, output_size = 32, 64, 8

    key = jax.random.PRNGKey(0)
    kx, k1, k2, k3, kb1, kb2, kb3 = jax.random.split(key, 7)

    # Weights in (in, out) layout (transpose of PyTorch's (out, in)).
    w1 = xavier_uniform(k1, input_size, hidden_size)
    w2 = xavier_uniform(k2, hidden_size, hidden_size)
    w3 = xavier_uniform(k3, hidden_size, output_size)

    # nn.Linear default bias init: U(-1/sqrt(fan_in), 1/sqrt(fan_in)).
    def bias(k, fan_in, n):
        lim = 1.0 / fan_in ** 0.5
        return jax.random.uniform(k, (1, n), jnp.float32,
                                  minval=-lim, maxval=lim)

    b1 = bias(kb1, input_size, hidden_size)
    b2 = bias(kb2, hidden_size, hidden_size)
    b3 = bias(kb3, hidden_size, output_size)

    # 1) Small batch, single grid step: tight check vs the pure-JAX reference.
    x8 = jax.random.normal(kx, (8, input_size), jnp.float32)
    out8 = jax.block_until_ready(
        policy_network_forward(x8, w1, b1, w2, b2, w3, b3))
    ref8 = _ref_forward(x8, w1, b1, w2, b2, w3, b3)
    assert out8.shape == (8, output_size)
    assert jnp.allclose(out8, ref8, atol=1e-5, rtol=1e-5)

    # 2) Ragged batch (B=90): default tm logic gives tm=48, grid=(2,), with a
    #    masked partial last block (no host-side pad / output slice).
    x90 = jax.random.normal(kx, (90, input_size), jnp.float32)
    out90 = jax.block_until_ready(
        policy_network_forward(x90, w1, b1, w2, b2, w3, b3))
    ref90 = _ref_forward(x90, w1, b1, w2, b2, w3, b3)
    assert out90.shape == (90, output_size)
    assert jnp.allclose(out90, ref90, atol=1e-5, rtol=1e-5)

    # 3) Explicit small tile -> exercises a 3-step full-block grid (B=96).
    x96 = jax.random.normal(kx, (96, input_size), jnp.float32)
    out96 = jax.block_until_ready(
        policy_network_forward(x96, w1, b1, w2, b2, w3, b3, tm=32))
    ref96 = _ref_forward(x96, w1, b1, w2, b2, w3, b3)
    assert out96.shape == (96, output_size)
    assert jnp.allclose(out96, ref96, atol=1e-5, rtol=1e-5)

    print("KERNEL_OK")
</pallas_src>

<mosaic_0001>
module attributes {stable_mosaic.version = 11 : i64} {
  func.func @policy_mlp_kernel(%arg0: i32, %arg1: memref<8x32xf32, #tpu.memory_space<vmem>>, %arg2: memref<32x64xf32, #tpu.memory_space<vmem>>, %arg3: memref<1x64xf32, #tpu.memory_space<vmem>>, %arg4: memref<64x64xf32, #tpu.memory_space<vmem>>, %arg5: memref<1x64xf32, #tpu.memory_space<vmem>>, %arg6: memref<64x8xf32, #tpu.memory_space<vmem>>, %arg7: memref<1x8xf32, #tpu.memory_space<vmem>>, %arg8: memref<8x8xf32, #tpu.memory_space<vmem>>) attributes {dimension_semantics = [#tpu.dimension_semantics<parallel>], iteration_bounds = array<i64: 1>, scalar_prefetch = 0 : i64, scratch_operands = 0 : i64, tpu.core_type = #tpu.core_type<tc>, window_params = [{transform_indices = @transform_0, window_bounds = array<i64: 8, 32>}, {pipeline_mode = #tpu.pipeline_mode<synchronous>, transform_indices = @transform_1, window_bounds = array<i64: 32, 64>}, {pipeline_mode = #tpu.pipeline_mode<synchronous>, transform_indices = @transform_2, window_bounds = array<i64: 1, 64>}, {pipeline_mode = #tpu.pipeline_mode<synchronous>, transform_indices = @transform_3, window_bounds = array<i64: 64, 64>}, {pipeline_mode = #tpu.pipeline_mode<synchronous>, transform_indices = @transform_4, window_bounds = array<i64: 1, 64>}, {pipeline_mode = #tpu.pipeline_mode<synchronous>, transform_indices = @transform_5, window_bounds = array<i64: 64, 8>}, {pipeline_mode = #tpu.pipeline_mode<synchronous>, transform_indices = @transform_6, window_bounds = array<i64: 1, 8>}, {transform_indices = @transform_7, window_bounds = array<i64: 8, 8>}]} {
    %c0 = arith.constant 0 : index
    %c0_0 = arith.constant 0 : index
    %0 = vector.load %arg1[%c0, %c0_0] : memref<8x32xf32, #tpu.memory_space<vmem>>, vector<8x32xf32>
    %c0_1 = arith.constant 0 : index
    %c0_2 = arith.constant 0 : index
    %1 = vector.load %arg2[%c0_1, %c0_2] : memref<32x64xf32, #tpu.memory_space<vmem>>, vector<32x64xf32>
    %cst = arith.constant dense<0.000000e+00> : vector<8x64xf32>
    %2 = tpu.matmul %0, %1, %cst {dimension_numbers = #tpu.dot_dimension_numbers<[1], [0], [0], [1], [0, 0, 1, 1], [], []>} : vector<8x32xf32>, vector<32x64xf32>, vector<8x64xf32> -> vector<8x64xf32>
    %c0_3 = arith.constant 0 : index
    %c0_4 = arith.constant 0 : index
    %3 = vector.load %arg3[%c0_3, %c0_4] : memref<1x64xf32, #tpu.memory_space<vmem>>, vector<1x64xf32>
    %4 = vector.broadcast %3 : vector<1x64xf32> to vector<8x64xf32>
    %5 = arith.addf %2, %4 : vector<8x64xf32>
    %cst_5 = arith.constant 0.000000e+00 : f32
    %6 = vector.broadcast %cst_5 : f32 to vector<8x64xf32>
    %7 = arith.maximumf %5, %6 : vector<8x64xf32>
    %c0_6 = arith.constant 0 : index
    %c0_7 = arith.constant 0 : index
    %8 = vector.load %arg4[%c0_6, %c0_7] : memref<64x64xf32, #tpu.memory_space<vmem>>, vector<64x64xf32>
    %cst_8 = arith.constant dense<0.000000e+00> : vector<8x64xf32>
    %9 = tpu.matmul %7, %8, %cst_8 {dimension_numbers = #tpu.dot_dimension_numbers<[1], [0], [0], [1], [0, 0, 1, 1], [], []>} : vector<8x64xf32>, vector<64x64xf32>, vector<8x64xf32> -> vector<8x64xf32>
    %c0_9 = arith.constant 0 : index
    %c0_10 = arith.constant 0 : index
    %10 = vector.load %arg5[%c0_9, %c0_10] : memref<1x64xf32, #tpu.memory_space<vmem>>, vector<1x64xf32>
    %11 = vector.broadcast %10 : vector<1x64xf32> to vector<8x64xf32>
    %12 = arith.addf %9, %11 : vector<8x64xf32>
    %cst_11 = arith.constant 0.000000e+00 : f32
    %13 = vector.broadcast %cst_11 : f32 to vector<8x64xf32>
    %14 = arith.maximumf %12, %13 : vector<8x64xf32>
    %c0_12 = arith.constant 0 : index
    %c0_13 = arith.constant 0 : index
    %15 = vector.load %arg6[%c0_12, %c0_13] : memref<64x8xf32, #tpu.memory_space<vmem>>, vector<64x8xf32>
    %cst_14 = arith.constant dense<0.000000e+00> : vector<8x8xf32>
    %16 = tpu.matmul %14, %15, %cst_14 {dimension_numbers = #tpu.dot_dimension_numbers<[1], [0], [0], [1], [0, 0, 1, 1], [], []>} : vector<8x64xf32>, vector<64x8xf32>, vector<8x8xf32> -> vector<8x8xf32>
    %c0_15 = arith.constant 0 : index
    %c0_16 = arith.constant 0 : index
    %17 = vector.load %arg7[%c0_15, %c0_16] : memref<1x8xf32, #tpu.memory_space<vmem>>, vector<1x8xf32>
    %18 = vector.broadcast %17 : vector<1x8xf32> to vector<8x8xf32>
    %19 = arith.addf %16, %18 : vector<8x8xf32>
    %20 = math.tanh %19 : vector<8x8xf32>
    %c0_17 = arith.constant 0 : index
    %c0_18 = arith.constant 0 : index
    %21 = vector.load %arg8[%c0_17, %c0_18] : memref<8x8xf32, #tpu.memory_space<vmem>>, vector<8x8xf32>
    tpu.vector_store %arg8[%c0_17, %c0_18], %20 {strides = array<i32>} : memref<8x8xf32, #tpu.memory_space<vmem>>, vector<8x8xf32>,
    return
  }
  func.func @transform_0(%arg0: i32) -> (i32, i32) {
    %c0_i32 = arith.constant 0 : i32
    %c0_i32_0 = arith.constant 0 : i32
    return %arg0, %c0_i32 : i32, i32
  }
  func.func @transform_1(%arg0: i32) -> (i32, i32) {
    %c0_i32 = arith.constant 0 : i32
    %c0_i32_0 = arith.constant 0 : i32
    %c0_i32_1 = arith.constant 0 : i32
    return %c0_i32, %c0_i32_0 : i32, i32
  }
  func.func @transform_2(%arg0: i32) -> (i32, i32) {
    %c0_i32 = arith.constant 0 : i32
    %c0_i32_0 = arith.constant 0 : i32
    %c0_i32_1 = arith.constant 0 : i32
    return %c0_i32, %c0_i32_0 : i32, i32
  }
  func.func @transform_3(%arg0: i32) -> (i32, i32) {
    %c0_i32 = arith.constant 0 : i32
    %c0_i32_0 = arith.constant 0 : i32
    %c0_i32_1 = arith.constant 0 : i32
    return %c0_i32, %c0_i32_0 : i32, i32
  }
  func.func @transform_4(%arg0: i32) -> (i32, i32) {
    %c0_i32 = arith.constant 0 : i32
    %c0_i32_0 = arith.constant 0 : i32
    %c0_i32_1 = arith.constant 0 : i32
    return %c0_i32, %c0_i32_0 : i32, i32
  }
  func.func @transform_5(%arg0: i32) -> (i32, i32) {
    %c0_i32 = arith.constant 0 : i32
    %c0_i32_0 = arith.constant 0 : i32
    %c0_i32_1 = arith.constant 0 : i32
    return %c0_i32, %c0_i32_0 : i32, i32
  }
  func.func @transform_6(%arg0: i32) -> (i32, i32) {
    %c0_i32 = arith.constant 0 : i32
    %c0_i32_0 = arith.constant 0 : i32
    %c0_i32_1 = arith.constant 0 : i32
    return %c0_i32, %c0_i32_0 : i32, i32
  }
  func.func @transform_7(%arg0: i32) -> (i32, i32) {
    %c0_i32 = arith.constant 0 : i32
    %c0_i32_0 = arith.constant 0 : i32
    return %arg0, %c0_i32 : i32, i32
  }
}

</mosaic_0001>

<llo_original>
// kernel: tpu_custom_call.1
$region0: #{tpu_custom_call.1}
  #allocation0 [shape = 'u32[]', space=smem, size = 0x4, offset = 0x4, fixed_abs, tag = 'smem constant byte address 0x4 - core index']
  #allocation1 [shape = 'u32[72,128]{1,0:T(1,128)}', space=vmem, size = 0x9000, scoped, tag = 'internal scratch']
  %s0 = inlined_call_operand.vmem [shape: f32[8,32], index: 0, kind: input, shape index: {}]
  %s1 = inlined_call_operand.hbm [shape: f32[32,64], index: 1, kind: input, shape index: {}]
  %s2 = inlined_call_operand.vmem [shape: f32[1,64], index: 2, kind: input, shape index: {}]
  %s3 = inlined_call_operand.vmem [shape: f32[64,64], index: 3, kind: input, shape index: {}]
  %s4 = inlined_call_operand.vmem [shape: f32[1,64], index: 4, kind: input, shape index: {}]
  %s5 = inlined_call_operand.vmem [shape: f32[64,8], index: 5, kind: input, shape index: {}]
  %s6 = inlined_call_operand.vmem [shape: f32[1,8], index: 6, kind: input, shape index: {}]
  %s7 = inlined_call_operand.hbm [shape: f32[8,8], index: 7, kind: output, shape index: {}]
  %s8 = sld [smem:[#allocation0]]
  $region42: #{tpu_custom_call.1} parent=0
    _
  %s10 = ssub.s32 1, %s8
  %s11 = scalar_select 0, %s10, %s8
  $region1: #{tpu_custom_call.1} parent=0
    #allocation2 [shape = 'u8[16384]{0}', space=vmem, size = 0x4000, scoped, tag = 'input window, operand 1, single buffered']
    #allocation3 [shape = 's32[1]{0}', space=sflag, size = 0x4, scoped, tag = 'scoped memory for tpu_custom_call.1']
    #allocation4 [shape = 's32[1]{0}', space=sflag, size = 0x4, scoped, tag = 'scoped memory for tpu_custom_call.1']
    #allocation5 [shape = 'u8[4096]{0}', space=vmem, size = 0x1000, scoped, tag = 'output window, operand 0, single buffered']
    %12 = vsyncpa [#allocation3], 0
    %13 = vsyncpa [#allocation4], 0
    // Predicated region
    $region2: #{tpu_custom_call.1} parent=1 // pred_check
      _
    $region3: #{tpu_custom_call.1} parent=1 // pred_check_branch
      %15 = sbr.rel (0) target = $region5
    $region4: #{tpu_custom_call.1} parent=1 // pred_region
      _
    $region5: #{tpu_custom_call.1} parent=1 // pred_fallthru
      _
    // Predicated region
    $region6: #{tpu_custom_call.1} parent=1 // pred_check
      _
    $region7: #{tpu_custom_call.1} parent=1 // pred_check_branch
      %17 = sbr.rel (0) target = $region9
    $region8: #{tpu_custom_call.1} parent=1 // pred_region
      %19 = vsyncadd [#allocation3], 0
      %s20 = sshll.u32 %s1, 4
      %s21 = int_to_ptr.hbm [resolvable:$true] %s20
      %s22 = sshll.u32 [#allocation2], 4
      %s23 = int_to_ptr.vmem [resolvable:$true] %s22
      %28 = dma.hbm_to_vmem [thread:$0]  %s21, 512, %s23, [#allocation3], 128, 128, 8
    $region9: #{tpu_custom_call.1} parent=1 // pred_fallthru
      _
    // Predicated region
    $region10: #{tpu_custom_call.1} parent=1 // pred_check
      _
    $region11: #{tpu_custom_call.1} parent=1 // pred_check_branch
      %30 = sbr.rel (0) target = $region13
    $region12: #{tpu_custom_call.1} parent=1 // pred_region
      _
    $region13: #{tpu_custom_call.1} parent=1 // pred_fallthru
      _
    // Predicated region
    $region14: #{tpu_custom_call.1} parent=1 // pred_check
      _
    $region15: #{tpu_custom_call.1} parent=1 // pred_check_branch
      %32 = sbr.rel (0) target = $region17
    $region16: #{tpu_custom_call.1} parent=1 // pred_region
      _
    $region17: #{tpu_custom_call.1} parent=1 // pred_fallthru
      _
    // Predicated region
    $region18: #{tpu_custom_call.1} parent=1 // pred_check
      _
    $region19: #{tpu_custom_call.1} parent=1 // pred_check_branch
      %34 = sbr.rel (0) target = $region21
    $region20: #{tpu_custom_call.1} parent=1 // pred_region
      _
    $region21: #{tpu_custom_call.1} parent=1 // pred_fallthru
      _
    // Predicated region
    $region22: #{tpu_custom_call.1} parent=1 // pred_check
      _
    $region23: #{tpu_custom_call.1} parent=1 // pred_check_branch
      %36 = sbr.rel (0) target = $region25
    $region24: #{tpu_custom_call.1} parent=1 // pred_region
      _
    $region25: #{tpu_custom_call.1} parent=1 // pred_fallthru
      _
    // Predicated region
    $region26: #{tpu_custom_call.1} parent=1 // pred_check
      _
    $region27: #{tpu_custom_call.1} parent=1 // pred_check_branch
      %38 = sbr.rel (0) target = $region29
    $region28: #{tpu_custom_call.1} parent=1 // pred_region
      _
    $region29: #{tpu_custom_call.1} parent=1 // pred_fallthru
      _
    // Predicated region
    $region30: #{tpu_custom_call.1} parent=1 // pred_check
      _
    $region31: #{tpu_custom_call.1} parent=1 // pred_check_branch
      %40 = sbr.rel (0) target = $region33
    $region32: #{tpu_custom_call.1} parent=1 // pred_region
      %42 = dma.done [#allocation3], 512
    $region33: #{tpu_custom_call.1} parent=1 // pred_fallthru
      _
    %v43 = vld [vmem:[%s0] sm:$0xff]
    %v44 = vld [vmem:[#allocation2] sm:$0xff]
    %v45 = vld [vmem:[#allocation2 + $0x8] sm:$0xff]
    %v46 = vld [vmem:[#allocation2 + $0x10] sm:$0xff]
    %v47 = vld [vmem:[#allocation2 + $0x18] sm:$0xff]
    %v48 = vld [vmem:[%s2] sm:$0x1]
    %v50 = vperm.slane %v48, 0
    %vm52 = vcmask 261120
    %v54 = vsel %vm52, %v43, 0
    %56 = vmatpush.msra.mxu0 0.0
    %57 = vmatpush.msra.mxu0 0.0
    %58 = vmatpush.msra.mxu0 0.0
    %59 = vmatpush.msra.mxu0 0.0
    %60 = vmatpush.msra.mxu0 0.0
    %61 = vmatpush.msra.mxu0 0.0
    %62 = vmatpush.msra.mxu0 0.0
    %63 = vmatpush.msra.mxu0 0.0
    %64 = vmatpush.msra.mxu0 0.0
    %65 = vmatpush.msra.mxu0 0.0
    %66 = vmatpush.msra.mxu0 0.0
    %67 = vmatpush.msra.mxu0 0.0
    %68 = vmatpush.msra.mxu0 %v47
    %69 = vmatpush.msra.mxu0 %v46
    %70 = vmatpush.msra.mxu0 %v45
    %71 = vmatpush.msra.mxu0 %v44
    %72 = vmatmul.f32.gmra.mxu0 %v54
    %v73 = vpop.f32.mrf.mxu0
    %v74 = vadd.f32 %v50, %v73
    %75 = vdwg.mxu0
    %v76 = vmax.f32 %v74, 0.0
    %v77 = vld [vmem:[%s3] sm:$0xff]
    %v78 = vld [vmem:[%s3 + $0x8] sm:$0xff]
    %v79 = vld [vmem:[%s3 + $0x10] sm:$0xff]
    %v80 = vld [vmem:[%s3 + $0x18] sm:$0xff]
    %v81 = vld [vmem:[%s3 + $0x20] sm:$0xff]
    %v82 = vld [vmem:[%s3 + $0x28] sm:$0xff]
    %v83 = vld [vmem:[%s3 + $0x30] sm:$0xff]
    %v84 = vld [vmem:[%s3 + $0x38] sm:$0xff]
    %v85 = vld [vmem:[%s4] sm:$0x1]
    %v87 = vperm.slane %v85, 0
    %vm89 = vcmask 523264
    %v91 = vsel %vm89, %v76, 0
    %93 = vmatpush.msra.mxu0 0.0
    %94 = vmatpush.msra.mxu0 0.0
    %95 = vmatpush.msra.mxu0 0.0
    %96 = vmatpush.msra.mxu0 0.0
    %97 = vmatpush.msra.mxu0 0.0
    %98 = vmatpush.msra.mxu0 0.0
    %99 = vmatpush.msra.mxu0 0.0
    %100 = vmatpush.msra.mxu0 0.0
    %101 = vmatpush.msra.mxu0 %v84
    %102 = vmatpush.msra.mxu0 %v83
    %103 = vmatpush.msra.mxu0 %v82
    %104 = vmatpush.msra.mxu0 %v81
    %105 = vmatpush.msra.mxu0 %v80
    %106 = vmatpush.msra.mxu0 %v79
    %107 = vmatpush.msra.mxu0 %v78
    %108 = vmatpush.msra.mxu0 %v77
    %109 = vmatmul.f32.gmra.mxu0 %v91
    %v110 = vpop.f32.mrf.mxu0
    %v111 = vadd.f32 %v87, %v110
    %112 = vdwg.mxu0
    %v113 = vmax.f32 %v111, 0.0
    %v114 = vld [vmem:[%s5] sm:$0xff]
    %v115 = vld [vmem:[%s5 + $0x8] sm:$0xff]
    %v116 = vld [vmem:[%s5 + $0x10] sm:$0xff]
    %v117 = vld [vmem:[%s5 + $0x18] sm:$0xff]
    %v118 = vld [vmem:[%s5 + $0x20] sm:$0xff]
    %v119 = vld [vmem:[%s5 + $0x28] sm:$0xff]
    %v120 = vld [vmem:[%s5 + $0x30] sm:$0xff]
    %v121 = vld [vmem:[%s5 + $0x38] sm:$0xff]
    %v122 = vld [vmem:[%s6] sm:$0x1]
    %v124 = vperm.slane %v122, 0
    %v127 = vsel %vm89, %v113, 0
    %129 = vmatpush.msra.mxu0 0.0
    %130 = vmatpush.msra.mxu0 0.0
    %131 = vmatpush.msra.mxu0 0.0
    %132 = vmatpush.msra.mxu0 0.0
    %133 = vmatpush.msra.mxu0 0.0
    %134 = vmatpush.msra.mxu0 0.0
    %135 = vmatpush.msra.mxu0 0.0
    %136 = vmatpush.msra.mxu0 0.0
    %137 = vmatpush.msra.mxu0 %v121
    %138 = vmatpush.msra.mxu0 %v120
    %139 = vmatpush.msra.mxu0 %v119
    %140 = vmatpush.msra.mxu0 %v118
    %141 = vmatpush.msra.mxu0 %v117
    %142 = vmatpush.msra.mxu0 %v116
    %143 = vmatpush.msra.mxu0 %v115
    %144 = vmatpush.msra.mxu0 %v114
    %145 = vmatmul.f32.gmra.mxu0 %v127
    %v146 = vpop.f32.mrf.mxu0
    %v147 = vadd.f32 %v124, %v146
    %148 = vdwg.mxu0
    %v149 = vtanh.pop %v147
    %vm150 = vcmask 64512
    %151 = vst.msk [vmem:[#allocation5] sm:$0xff] %vm150, %v149
    // Predicated region
    $region34: #{tpu_custom_call.1} parent=1 // pred_check
      _
    $region35: #{tpu_custom_call.1} parent=1 // pred_check_branch
      %153 = sbr.rel (0) target = $region37
    $region36: #{tpu_custom_call.1} parent=1 // pred_region
      %155 = vsyncadd [#allocation4], 0
      %s157 = sshll.u32 [#allocation5], 4
      %s158 = int_to_ptr.vmem [resolvable:$true] %s157
      %s159 = sshll.u32 %s7, 4
      %s160 = int_to_ptr.hbm [resolvable:$true] %s159
      %162 = dma.vmem_to_hbm [thread:$0]  %s158, 128, %s160, [#allocation4]
    $region37: #{tpu_custom_call.1} parent=1 // pred_fallthru
      _
    // Predicated region
    $region38: #{tpu_custom_call.1} parent=1 // pred_check
      _
    $region39: #{tpu_custom_call.1} parent=1 // pred_check_branch
      %164 = sbr.rel (0) target = $region41
    $region40: #{tpu_custom_call.1} parent=1 // pred_region
      %166 = dma.done [#allocation4], 128
    $region41: #{tpu_custom_call.1} parent=1 // pred_fallthru
      _
    %167 = vsyncpa [#allocation3], 1
    %168 = vsyncpa [#allocation4], 1

</llo_original>
